<compile_context>
chip_gen: v7x
topology: tpu7x:2x2x1
jax: 0.10.0
libtpu: 0.0.40
codegen_flags: <defaults>
</compile_context>

<pallas_src>
import jax
import jax.numpy as jnp
from jax.experimental import pallas as pl
from jax.experimental.pallas import tpu as pltpu

# ---- small, module-consistent config -------------------------------------------------
N, C, H, W = 2, 4, 16, 16      # input batch / channels / spatial  (NCHW at the wrapper)
EMB_SIZE = 32                  # emb_model.num_features
NUM_CLASSES = 5                # len(classes)


# ---- Pallas kernel: embedder hot path + classifier head -------------------------------
def singletask_classifier_kernel(x_ref, w_emb_t_ref, w_cls_t_ref, b_ref, out_ref):
    # x_ref:       (N, C, S)            NCHW with spatial flattened; S on the lane axis
    # w_emb_t_ref: (EMB_SIZE, C)        synthetic backbone pointwise projection (pre-T)
    # w_cls_t_ref: (EMB_SIZE, NUM_CLS)  classifier Linear weight, pre-transposed
    # b_ref:       (1, NUM_CLS)         classifier Linear bias
    # out_ref:     (N, NUM_CLS)
    n_batch = x_ref.shape[0]
    w_emb_t = w_emb_t_ref[...]                                   # (E, C)

    # "backbone": per-batch lane-dense matmul (E, C) @ (C, S) -> (E, S), ReLU on VPU,
    # global average pool as a lane-axis (XLU) reduction.  N is tiny -> static unroll,
    # which avoids a batched dot_general and its relayouts.
    emb_rows = []
    for i in range(n_batch):
        h = jnp.dot(w_emb_t, x_ref[i], preferred_element_type=jnp.float32)  # (E, S)
        h = jnp.maximum(h, 0.0)
        emb_rows.append(jnp.mean(h, axis=-1)[None, :])                      # (1, E)
    emb = jnp.concatenate(emb_rows, axis=0)                                 # (N, E)

    # classifier: Dropout (identity at inference) + Linear(emb_size, num_classes)
    logits = jnp.dot(emb, w_cls_t_ref[...],
                     preferred_element_type=jnp.float32) + b_ref[...]
    out_ref[...] = logits.astype(out_ref.dtype)


def singletask_classifier(x_nchw, w_emb, w_cls, b_cls):
    """x_nchw: (N, C, H, W) f32; w_emb: (C, E); w_cls: (NUM_CLS, E); b_cls: (NUM_CLS,)."""
    n, c, h, w = x_nchw.shape
    s = h * w
    num_classes = w_cls.shape[0]

    # Free reshape of NCHW: spatial (=256, multiple of 128) lands on the lane axis.
    x = x_nchw.reshape(n, c, s)
    # Wrapper-side layout plumbing: pre-transpose both weights once.
    w_emb_t = w_emb.T                 # (E, C)
    w_cls_t = w_cls.T                 # (E, NUM_CLASSES)
    b2d = b_cls.reshape(1, -1)

    emb = w_emb.shape[1]
    flops = (2 * n * s * c * emb       # pointwise projection
             + 2 * n * s * emb         # ReLU + GAP accumulate
             + 2 * n * emb * num_classes)
    bytes_accessed = 4 * (x.size + w_emb_t.size + w_cls_t.size + b2d.size
                          + n * num_classes)

    return pl.pallas_call(
        singletask_classifier_kernel,
        out_shape=jax.ShapeDtypeStruct((n, num_classes), jnp.float32),
        in_specs=[pl.BlockSpec(memory_space=pltpu.MemorySpace.VMEM)] * 4,
        out_specs=pl.BlockSpec(memory_space=pltpu.MemorySpace.VMEM),
        cost_estimate=pl.CostEstimate(flops=flops, transcendentals=0,
                                      bytes_accessed=bytes_accessed),
    )(x, w_emb_t, w_cls_t, b2d)


# ---- pure-JAX reference (module semantics) for a correctness check ---------------------
def reference_forward(x_nchw, w_emb, w_cls, b_cls):
    n, c, h, w = x_nchw.shape
    xf = jnp.transpose(x_nchw, (0, 2, 3, 1)).reshape(n, h * w, c)
    hft = jnp.maximum(jnp.einsum("nsc,ce->nse", xf, w_emb), 0.0)
    emb = jnp.mean(hft, axis=1)
    return emb @ w_cls.T + b_cls


if __name__ == "__main__":
    key = jax.random.PRNGKey(0)
    k_x, k_emb, k_cls = jax.random.split(key, 3)

    # deterministic example input (NCHW, as the PyTorch module expects)
    x = jax.random.normal(k_x, (N, C, H, W), dtype=jnp.float32)

    # synthetic backbone params
    w_emb = (jax.random.normal(k_emb, (C, EMB_SIZE), dtype=jnp.float32)
             * jnp.sqrt(2.0 / C))

    # classifier params: kaiming_normal_(nonlinearity='relu') weight, zeros bias
    w_cls = (jax.random.normal(k_cls, (NUM_CLASSES, EMB_SIZE), dtype=jnp.float32)
             * jnp.sqrt(2.0 / EMB_SIZE))
    b_cls = jnp.zeros((NUM_CLASSES,), dtype=jnp.float32)

    out = singletask_classifier(x, w_emb, w_cls, b_cls)
    out = jax.block_until_ready(out)

    ref = reference_forward(x, w_emb, w_cls, b_cls)
    assert out.shape == (N, NUM_CLASSES)
    assert jnp.allclose(out, ref, atol=1e-5, rtol=1e-5), "mismatch vs JAX reference"

    print("KERNEL_OK")
</pallas_src>

<mosaic_0001>
module attributes {stable_mosaic.version = 11 : i64} {
  func.func @singletask_classifier_kernel(%arg0: memref<2x4x256xf32, #tpu.memory_space<vmem>>, %arg1: memref<32x4xf32, #tpu.memory_space<vmem>>, %arg2: memref<32x5xf32, #tpu.memory_space<vmem>>, %arg3: memref<1x5xf32, #tpu.memory_space<vmem>>, %arg4: memref<2x5xf32, #tpu.memory_space<vmem>>) attributes {dimension_semantics = [], scalar_prefetch = 0 : i64, scratch_operands = 0 : i64, tpu.core_type = #tpu.core_type<tc>} {
    %c0 = arith.constant 0 : index
    %c0_0 = arith.constant 0 : index
    %0 = vector.load %arg1[%c0, %c0_0] : memref<32x4xf32, #tpu.memory_space<vmem>>, vector<32x4xf32>
    %c0_1 = arith.constant 0 : index
    %c0_2 = arith.constant 0 : index
    %c0_3 = arith.constant 0 : index
    %1 = vector.load %arg0[%c0_1, %c0_2, %c0_3] : memref<2x4x256xf32, #tpu.memory_space<vmem>>, vector<1x4x256xf32>
    %2 = vector.shape_cast %1 : vector<1x4x256xf32> to vector<4x256xf32>
    %cst = arith.constant dense<0.000000e+00> : vector<32x256xf32>
    %3 = tpu.matmul %0, %2, %cst {dimension_numbers = #tpu.dot_dimension_numbers<[1], [0], [0], [1], [0, 0, 1, 1], [], []>} : vector<32x4xf32>, vector<4x256xf32>, vector<32x256xf32> -> vector<32x256xf32>
    %cst_4 = arith.constant 0.000000e+00 : f32
    %4 = vector.broadcast %cst_4 : f32 to vector<32x256xf32>
    %5 = arith.maximumf %3, %4 : vector<32x256xf32>
    %cst_5 = arith.constant dense<0.000000e+00> : vector<32xf32>
    %6 = vector.multi_reduction <add>, %5, %cst_5 [1] : vector<32x256xf32> to vector<32xf32>
    %cst_6 = arith.constant 2.560000e+02 : f32
    %7 = vector.broadcast %cst_6 : f32 to vector<32xf32>
    %8 = arith.divf %6, %7 : vector<32xf32>
    %9 = vector.shape_cast %8 : vector<32xf32> to vector<1x32xf32>
    %c1 = arith.constant 1 : index
    %c0_7 = arith.constant 0 : index
    %c0_8 = arith.constant 0 : index
    %10 = vector.load %arg0[%c1, %c0_7, %c0_8] : memref<2x4x256xf32, #tpu.memory_space<vmem>>, vector<1x4x256xf32>
    %11 = vector.shape_cast %10 : vector<1x4x256xf32> to vector<4x256xf32>
    %cst_9 = arith.constant dense<0.000000e+00> : vector<32x256xf32>
    %12 = tpu.matmul %0, %11, %cst_9 {dimension_numbers = #tpu.dot_dimension_numbers<[1], [0], [0], [1], [0, 0, 1, 1], [], []>} : vector<32x4xf32>, vector<4x256xf32>, vector<32x256xf32> -> vector<32x256xf32>
    %cst_10 = arith.constant 0.000000e+00 : f32
    %13 = vector.broadcast %cst_10 : f32 to vector<32x256xf32>
    %14 = arith.maximumf %12, %13 : vector<32x256xf32>
    %cst_11 = arith.constant dense<0.000000e+00> : vector<32xf32>
    %15 = vector.multi_reduction <add>, %14, %cst_11 [1] : vector<32x256xf32> to vector<32xf32>
    %cst_12 = arith.constant 2.560000e+02 : f32
    %16 = vector.broadcast %cst_12 : f32 to vector<32xf32>
    %17 = arith.divf %15, %16 : vector<32xf32>
    %18 = vector.shape_cast %17 : vector<32xf32> to vector<1x32xf32>
    %19 = tpu.concatenate %9, %18 in 0 : vector<1x32xf32>, vector<1x32xf32> -> vector<2x32xf32>
    %c0_13 = arith.constant 0 : index
    %c0_14 = arith.constant 0 : index
    %20 = vector.load %arg2[%c0_13, %c0_14] : memref<32x5xf32, #tpu.memory_space<vmem>>, vector<32x5xf32>
    %cst_15 = arith.constant dense<0.000000e+00> : vector<2x5xf32>
    %21 = tpu.matmul %19, %20, %cst_15 {dimension_numbers = #tpu.dot_dimension_numbers<[1], [0], [0], [1], [0, 0, 1, 1], [], []>} : vector<2x32xf32>, vector<32x5xf32>, vector<2x5xf32> -> vector<2x5xf32>
    %c0_16 = arith.constant 0 : index
    %c0_17 = arith.constant 0 : index
    %22 = vector.load %arg3[%c0_16, %c0_17] : memref<1x5xf32, #tpu.memory_space<vmem>>, vector<1x5xf32>
    %23 = vector.broadcast %22 : vector<1x5xf32> to vector<2x5xf32>
    %24 = arith.addf %21, %23 : vector<2x5xf32>
    %c0_18 = arith.constant 0 : index
    %c0_19 = arith.constant 0 : index
    %25 = vector.load %arg4[%c0_18, %c0_19] : memref<2x5xf32, #tpu.memory_space<vmem>>, vector<2x5xf32>
    tpu.vector_store %arg4[%c0_18, %c0_19], %24 {strides = array<i32>} : memref<2x5xf32, #tpu.memory_space<vmem>>, vector<2x5xf32>,
    return
  }
}

</mosaic_0001>

<llo_original>
// kernel: tpu_custom_call.1
$region0: #{tpu_custom_call.1}
  #allocation0 [shape = 'u32[]', space=smem, size = 0x4, offset = 0x4, fixed_abs, tag = 'smem constant byte address 0x4 - core index']
  #allocation1 [shape = 'u32[144,128]{1,0:T(1,128)}', space=vmem, size = 0x12000, scoped, tag = 'internal scratch']
  %s0 = inlined_call_operand.vmem [shape: f32[2,4,256], index: 0, kind: input, shape index: {}]
  %s1 = inlined_call_operand.vmem [shape: f32[32,4], index: 1, kind: input, shape index: {}]
  %s2 = inlined_call_operand.vmem [shape: f32[32,5], index: 2, kind: input, shape index: {}]
  %s3 = inlined_call_operand.vmem [shape: f32[1,5], index: 3, kind: input, shape index: {}]
  %s4 = inlined_call_operand.hbm [shape: f32[2,5], index: 4, kind: output, shape index: {}]
  %s5 = sld [smem:[#allocation0]]
  $region26: #{tpu_custom_call.1} parent=0
    _
  %s7 = ssub.s32 1, %s5
  %s8 = scalar_select 0, %s7, %s5
  $region1: #{tpu_custom_call.1} parent=0
    #allocation2 [shape = 'u8[1024]{0}', space=vmem, size = 0x400, scoped, tag = 'output window, operand 0, single buffered']
    #allocation3 [shape = 's32[1]{0}', space=sflag, size = 0x4, scoped, tag = 'scoped memory for tpu_custom_call.1']
    %9 = vsyncpa [#allocation3], 0
    // Predicated region
    $region2: #{tpu_custom_call.1} parent=1 // pred_check
      _
    $region3: #{tpu_custom_call.1} parent=1 // pred_check_branch
      %11 = sbr.rel (0) target = $region5
    $region4: #{tpu_custom_call.1} parent=1 // pred_region
      _
    $region5: #{tpu_custom_call.1} parent=1 // pred_fallthru
      _
    // Predicated region
    $region6: #{tpu_custom_call.1} parent=1 // pred_check
      _
    $region7: #{tpu_custom_call.1} parent=1 // pred_check_branch
      %13 = sbr.rel (0) target = $region9
    $region8: #{tpu_custom_call.1} parent=1 // pred_region
      _
    $region9: #{tpu_custom_call.1} parent=1 // pred_fallthru
      _
    // Predicated region
    $region10: #{tpu_custom_call.1} parent=1 // pred_check
      _
    $region11: #{tpu_custom_call.1} parent=1 // pred_check_branch
      %15 = sbr.rel (0) target = $region13
    $region12: #{tpu_custom_call.1} parent=1 // pred_region
      _
    $region13: #{tpu_custom_call.1} parent=1 // pred_fallthru
      _
    // Predicated region
    $region14: #{tpu_custom_call.1} parent=1 // pred_check
      _
    $region15: #{tpu_custom_call.1} parent=1 // pred_check_branch
      %17 = sbr.rel (0) target = $region17
    $region16: #{tpu_custom_call.1} parent=1 // pred_region
      _
    $region17: #{tpu_custom_call.1} parent=1 // pred_fallthru
      _
    %v18 = vld [vmem:[%s1] sm:$0xff]
    %v19 = vld [vmem:[%s1 + $0x8] sm:$0xff]
    %v20 = vld [vmem:[%s1 + $0x10] sm:$0xff]
    %v21 = vld [vmem:[%s1 + $0x18] sm:$0xff]
    %v22 = vld [vmem:[%s0] sm:$0xff]
    %v24 = vcombine.high %v22, %v22
    %vm25 = vcmask 31744
    %v27 = vsel %vm25, %v18, 0
    %v30 = vsel %vm25, %v19, 0
    %v33 = vsel %vm25, %v20, 0
    %v36 = vsel %vm25, %v21, 0
    %vm38 = vcmask 1043456
    %v39 = vsel %vm38, %v22, 0
    %v41 = vsel %vm38, %v24, 0
    %43 = vmatprep.subr.mxu0 %v41
    %44 = vmatpush1.msra.mxu0 %v39
    %45 = vmatprep.subr.mxu0 0.0
    %46 = vmatpush1.msra.mxu0 0.0
    %47 = vmatprep.subr.mxu0 0.0
    %48 = vmatpush1.msra.mxu0 0.0
    %49 = vmatprep.subr.mxu0 0.0
    %50 = vmatpush1.msra.mxu0 0.0
    %51 = vmatprep.subr.mxu0 0.0
    %52 = vmatpush1.msra.mxu0 0.0
    %53 = vmatprep.subr.mxu0 0.0
    %54 = vmatpush1.msra.mxu0 0.0
    %55 = vmatprep.subr.mxu0 0.0
    %56 = vmatpush1.msra.mxu0 0.0
    %57 = vmatprep.subr.mxu0 0.0
    %58 = vmatpush1.msra.mxu0 0.0
    %59 = vmatprep.subr.mxu0 0.0
    %60 = vmatpush1.msra.mxu0 0.0
    %61 = vmatprep.subr.mxu0 0.0
    %62 = vmatpush1.msra.mxu0 0.0
    %63 = vmatprep.subr.mxu0 0.0
    %64 = vmatpush1.msra.mxu0 0.0
    %65 = vmatprep.subr.mxu0 0.0
    %66 = vmatpush1.msra.mxu0 0.0
    %67 = vmatprep.subr.mxu0 0.0
    %68 = vmatpush1.msra.mxu0 0.0
    %69 = vmatprep.subr.mxu0 0.0
    %70 = vmatpush1.msra.mxu0 0.0
    %71 = vmatprep.subr.mxu0 0.0
    %72 = vmatpush1.msra.mxu0 0.0
    %73 = vmatprep.subr.mxu0 0.0
    %74 = vmatpush1.msra.mxu0 0.0
    %75 = vmatprep.subr.mxu0 0.0
    %76 = vmatpush1.msra.mxu0 0.0
    %77 = vmatprep.subr.mxu0 0.0
    %78 = vmatpush1.msra.mxu0 0.0
    %79 = vmatprep.subr.mxu0 0.0
    %80 = vmatpush1.msra.mxu0 0.0
    %81 = vmatprep.subr.mxu0 0.0
    %82 = vmatpush1.msra.mxu0 0.0
    %83 = vmatprep.subr.mxu0 0.0
    %84 = vmatpush1.msra.mxu0 0.0
    %85 = vmatprep.subr.mxu0 0.0
    %86 = vmatpush1.msra.mxu0 0.0
    %87 = vmatprep.subr.mxu0 0.0
    %88 = vmatpush1.msra.mxu0 0.0
    %89 = vmatprep.subr.mxu0 0.0
    %90 = vmatpush1.msra.mxu0 0.0
    %91 = vmatprep.subr.mxu0 0.0
    %92 = vmatpush1.msra.mxu0 0.0
    %93 = vmatprep.subr.mxu0 0.0
    %94 = vmatpush1.msra.mxu0 0.0
    %95 = vmatprep.subr.mxu0 0.0
    %96 = vmatpush1.msra.mxu0 0.0
    %97 = vmatprep.subr.mxu0 0.0
    %98 = vmatpush1.msra.mxu0 0.0
    %99 = vmatprep.subr.mxu0 0.0
    %100 = vmatpush1.msra.mxu0 0.0
    %101 = vmatprep.subr.mxu0 0.0
    %102 = vmatpush1.msra.mxu0 0.0
    %103 = vmatprep.subr.mxu0 0.0
    %104 = vmatpush1.msra.mxu0 0.0
    %105 = vmatprep.subr.mxu0 0.0
    %106 = vmatpush1.msra.mxu0 0.0
    %107 = vmatprep.mubr.f32.mxu0 0.0
    %108 = vmatmul.mubr.f32.gmra.mrb[0].mxu0 %v27
    %v109 = vpop.f32.mrb[0].mxu0
    %v110 = vadd.f32 0.0, %v109
    %v111 = vpop.f32.mrb[0].mxu0
    %v112 = vadd.f32 0.0, %v111
    %113 = vmatprep.mubr.f32.mxu0 0.0
    %114 = vmatmul.mubr.f32.gmra.mrb[0].mxu0 %v30
    %v115 = vpop.f32.mrb[0].mxu0
    %v116 = vadd.f32 0.0, %v115
    %v117 = vpop.f32.mrb[0].mxu0
    %v118 = vadd.f32 0.0, %v117
    %119 = vmatprep.mubr.f32.mxu0 0.0
    %120 = vmatmul.mubr.f32.gmra.mrb[0].mxu0 %v33
    %v121 = vpop.f32.mrb[0].mxu0
    %v122 = vadd.f32 0.0, %v121
    %v123 = vpop.f32.mrb[0].mxu0
    %v124 = vadd.f32 0.0, %v123
    %125 = vmatprep.mubr.f32.mxu0 0.0
    %126 = vmatmul.mubr.f32.gmra.mrb[0].mxu0 %v36
    %v127 = vpop.f32.mrb[0].mxu0
    %v128 = vadd.f32 0.0, %v127
    %v129 = vpop.f32.mrb[0].mxu0
    %v130 = vadd.f32 0.0, %v129
    %131 = vdwg.mxu0
    %v132 = vmax.f32 %v110, 0.0
    %v133 = vmax.f32 %v112, 0.0
    %v134 = vmax.f32 %v116, 0.0
    %v135 = vmax.f32 %v118, 0.0
    %v136 = vmax.f32 %v122, 0.0
    %v137 = vmax.f32 %v124, 0.0
    %v138 = vmax.f32 %v128, 0.0
    %v139 = vmax.f32 %v130, 0.0
    %v140 = vadd.f32 %v132, %v133
    %141 = vadd.xlane.f32.xlu0 %v140
    %v142 = vpop.xlane.xlu0 %141
    %v143 = vadd.f32 %v134, %v135
    %144 = vadd.xlane.f32.xlu0 %v143
    %v145 = vpop.xlane.xlu0 %144
    %v146 = vadd.f32 %v136, %v137
    %147 = vadd.xlane.f32.xlu0 %v146
    %v148 = vpop.xlane.xlu0 %147
    %v149 = vadd.f32 %v138, %v139
    %150 = vadd.xlane.f32.xlu0 %v149
    %v151 = vpop.xlane.xlu0 %150
    %v152 = vrcp.pop 256.0
    %v153 = vmul.f32 %v142, %v152
    %v154 = vmul.f32 %v145, %v152
    %v155 = vmul.f32 %v148, %v152
    %v156 = vmul.f32 %v151, %v152
    %s157 = scalar_lea.vmem %s0, 8
    %v158 = vld [vmem:[%s157] sm:$0xff]
    %v160 = vcombine.high %v158, %v158
    %v161 = vsel %vm38, %v158, 0
    %v163 = vsel %vm38, %v160, 0
    %165 = vmatprep.subr.mxu0 %v163
    %166 = vmatpush1.msra.mxu0 %v161
    %167 = vmatprep.subr.mxu0 0.0
    %168 = vmatpush1.msra.mxu0 0.0
    %169 = vmatprep.subr.mxu0 0.0
    %170 = vmatpush1.msra.mxu0 0.0
    %171 = vmatprep.subr.mxu0 0.0
    %172 = vmatpush1.msra.mxu0 0.0
    %173 = vmatprep.subr.mxu0 0.0
    %174 = vmatpush1.msra.mxu0 0.0
    %175 = vmatprep.subr.mxu0 0.0
    %176 = vmatpush1.msra.mxu0 0.0
    %177 = vmatprep.subr.mxu0 0.0
    %178 = vmatpush1.msra.mxu0 0.0
    %179 = vmatprep.subr.mxu0 0.0
    %180 = vmatpush1.msra.mxu0 0.0
    %181 = vmatprep.subr.mxu0 0.0
    %182 = vmatpush1.msra.mxu0 0.0
    %183 = vmatprep.subr.mxu0 0.0
    %184 = vmatpush1.msra.mxu0 0.0
    %185 = vmatprep.subr.mxu0 0.0
    %186 = vmatpush1.msra.mxu0 0.0
    %187 = vmatprep.subr.mxu0 0.0
    %188 = vmatpush1.msra.mxu0 0.0
    %189 = vmatprep.subr.mxu0 0.0
    %190 = vmatpush1.msra.mxu0 0.0
    %191 = vmatprep.subr.mxu0 0.0
    %192 = vmatpush1.msra.mxu0 0.0
    %193 = vmatprep.subr.mxu0 0.0
    %194 = vmatpush1.msra.mxu0 0.0
    %195 = vmatprep.subr.mxu0 0.0
    %196 = vmatpush1.msra.mxu0 0.0
    %197 = vmatprep.subr.mxu0 0.0
    %198 = vmatpush1.msra.mxu0 0.0
    %199 = vmatprep.subr.mxu0 0.0
    %200 = vmatpush1.msra.mxu0 0.0
    %201 = vmatprep.subr.mxu0 0.0
    %202 = vmatpush1.msra.mxu0 0.0
    %203 = vmatprep.subr.mxu0 0.0
    %204 = vmatpush1.msra.mxu0 0.0
    %205 = vmatprep.subr.mxu0 0.0
    %206 = vmatpush1.msra.mxu0 0.0
    %207 = vmatprep.subr.mxu0 0.0
    %208 = vmatpush1.msra.mxu0 0.0
    %209 = vmatprep.subr.mxu0 0.0
    %210 = vmatpush1.msra.mxu0 0.0
    %211 = vmatprep.subr.mxu0 0.0
    %212 = vmatpush1.msra.mxu0 0.0
    %213 = vmatprep.subr.mxu0 0.0
    %214 = vmatpush1.msra.mxu0 0.0
    %215 = vmatprep.subr.mxu0 0.0
    %216 = vmatpush1.msra.mxu0 0.0
    %217 = vmatprep.subr.mxu0 0.0
    %218 = vmatpush1.msra.mxu0 0.0
    %219 = vmatprep.subr.mxu0 0.0
    %220 = vmatpush1.msra.mxu0 0.0
    %221 = vmatprep.subr.mxu0 0.0
    %222 = vmatpush1.msra.mxu0 0.0
    %223 = vmatprep.subr.mxu0 0.0
    %224 = vmatpush1.msra.mxu0 0.0
    %225 = vmatprep.subr.mxu0 0.0
    %226 = vmatpush1.msra.mxu0 0.0
    %227 = vmatprep.subr.mxu0 0.0
    %228 = vmatpush1.msra.mxu0 0.0
    %229 = vmatprep.mubr.f32.mxu0 0.0
    %230 = vmatmul.mubr.f32.gmra.mrb[0].mxu0 %v27
    %v231 = vpop.f32.mrb[0].mxu0
    %v232 = vadd.f32 0.0, %v231
    %v233 = vpop.f32.mrb[0].mxu0
    %v234 = vadd.f32 0.0, %v233
    %235 = vmatprep.mubr.f32.mxu0 0.0
    %236 = vmatmul.mubr.f32.gmra.mrb[0].mxu0 %v30
    %v237 = vpop.f32.mrb[0].mxu0
    %v238 = vadd.f32 0.0, %v237
    %v239 = vpop.f32.mrb[0].mxu0
    %v240 = vadd.f32 0.0, %v239
    %241 = vmatprep.mubr.f32.mxu0 0.0
    %242 = vmatmul.mubr.f32.gmra.mrb[0].mxu0 %v33
    %v243 = vpop.f32.mrb[0].mxu0
    %v244 = vadd.f32 0.0, %v243
    %v245 = vpop.f32.mrb[0].mxu0
    %v246 = vadd.f32 0.0, %v245
    %247 = vmatprep.mubr.f32.mxu0 0.0
    %248 = vmatmul.mubr.f32.gmra.mrb[0].mxu0 %v36
    %v249 = vpop.f32.mrb[0].mxu0
    %v250 = vadd.f32 0.0, %v249
    %v251 = vpop.f32.mrb[0].mxu0
    %v252 = vadd.f32 0.0, %v251
    %253 = vdwg.mxu0
    %v254 = vmax.f32 %v232, 0.0
    %v255 = vmax.f32 %v234, 0.0
    %v256 = vmax.f32 %v238, 0.0
    %v257 = vmax.f32 %v240, 0.0
    %v258 = vmax.f32 %v244, 0.0
    %v259 = vmax.f32 %v246, 0.0
    %v260 = vmax.f32 %v250, 0.0
    %v261 = vmax.f32 %v252, 0.0
    %v262 = vadd.f32 %v254, %v255
    %263 = vadd.xlane.f32.xlu0 %v262
    %v264 = vpop.xlane.xlu0 %263
    %v265 = vadd.f32 %v256, %v257
    %266 = vadd.xlane.f32.xlu0 %v265
    %v267 = vpop.xlane.xlu0 %266
    %v268 = vadd.f32 %v258, %v259
    %269 = vadd.xlane.f32.xlu0 %v268
    %v270 = vpop.xlane.xlu0 %269
    %v271 = vadd.f32 %v260, %v261
    %272 = vadd.xlane.f32.xlu0 %v271
    %v273 = vpop.xlane.xlu0 %272
    %v274 = vmul.f32 %v264, %v152
    %v275 = vmul.f32 %v267, %v152
    %v276 = vmul.f32 %v270, %v152
    %v277 = vmul.f32 %v273, %v152
    %v282 = vlaneseq
    %v283 = vand.u32 %v282, 127
    %v284 = vlaneseq
    %v285 = vshrl.u32 %v284, 7
    %v286 = vsub.s32 %v283, %v285
    %v287 = vrot.slane %v153, %v286
    %v288 = vadd.s32 %v283, 4294967288
    %v289 = vlaneseq
    %v290 = vshrl.u32 %v289, 7
    %v291 = vsub.s32 %v288, %v290
    %v292 = vrot.slane %v154, %v291
    %vm293 = vcmask 130112
    %v294 = vsel %vm293, %v292, %v287
    %v295 = vadd.s32 %v283, 4294967280
    %v296 = vlaneseq
    %v297 = vshrl.u32 %v296, 7
    %v298 = vsub.s32 %v295, %v297
    %v299 = vrot.slane %v155, %v298
    %vm300 = vcmask 195712
    %v301 = vsel %vm300, %v299, %v294
    %v302 = vadd.s32 %v283, 4294967272
    %v303 = vlaneseq
    %v304 = vshrl.u32 %v303, 7
    %v305 = vsub.s32 %v302, %v304
    %v306 = vrot.slane %v156, %v305
    %vm307 = vcmask 261312
    %v308 = vsel %vm307, %v306, %v301
    %v314 = vlaneseq
    %v315 = vshrl.u32 %v314, 7
    %v316 = vsub.s32 %v283, %v315
    %v317 = vrot.slane %v274, %v316
    %v318 = vlaneseq
    %v319 = vshrl.u32 %v318, 7
    %v320 = vsub.s32 %v288, %v319
    %v321 = vrot.slane %v275, %v320
    %v322 = vsel %vm293, %v321, %v317
    %v323 = vlaneseq
    %v324 = vshrl.u32 %v323, 7
    %v325 = vsub.s32 %v295, %v324
    %v326 = vrot.slane %v276, %v325
    %v327 = vsel %vm300, %v326, %v322
    %v328 = vlaneseq
    %v329 = vshrl.u32 %v328, 7
    %v330 = vsub.s32 %v302, %v329
    %v331 = vrot.slane %v277, %v330
    %v332 = vsel %vm307, %v331, %v327
    %vm334 = vcmask 1040384
    %v335 = vsel %vm334, %v308, %v332
    %v336 = vld [vmem:[%s2] sm:$0xff]
    %v337 = vld [vmem:[%s2 + $0x8] sm:$0xff]
    %v338 = vld [vmem:[%s2 + $0x10] sm:$0xff]
    %v339 = vld [vmem:[%s2 + $0x18] sm:$0xff]
    %v340 = vld [vmem:[%s3] sm:$0x1]
    %v342 = vlaneseq
    %v343 = vshrl.u32 %v342, 7
    %v344 = vsub.s32 0, %v343
    %v345 = vrot.slane %v340, %v344
    %vm347 = vcmask 261120
    %v349 = vsel %vm347, %v335, 0
    %351 = vmatprep.subr.mxu0 0.0
    %352 = vmatpush1.msra.mxu0 %v336
    %353 = vmatprep.subr.mxu0 0.0
    %354 = vmatpush1.msra.mxu0 %v337
    %355 = vmatprep.subr.mxu0 0.0
    %356 = vmatpush1.msra.mxu0 %v338
    %357 = vmatprep.subr.mxu0 0.0
    %358 = vmatpush1.msra.mxu0 %v339
    %359 = vmatprep.subr.mxu0 0.0
    %360 = vmatpush1.msra.mxu0 0.0
    %361 = vmatprep.subr.mxu0 0.0
    %362 = vmatpush1.msra.mxu0 0.0
    %363 = vmatprep.subr.mxu0 0.0
    %364 = vmatpush1.msra.mxu0 0.0
    %365 = vmatprep.subr.mxu0 0.0
    %366 = vmatpush1.msra.mxu0 0.0
    %367 = vmatprep.subr.mxu0 0.0
    %368 = vmatpush1.msra.mxu0 0.0
    %369 = vmatprep.subr.mxu0 0.0
    %370 = vmatpush1.msra.mxu0 0.0
    %371 = vmatprep.subr.mxu0 0.0
    %372 = vmatpush1.msra.mxu0 0.0
    %373 = vmatprep.subr.mxu0 0.0
    %374 = vmatpush1.msra.mxu0 0.0
    %375 = vmatprep.subr.mxu0 0.0
    %376 = vmatpush1.msra.mxu0 0.0
    %377 = vmatprep.subr.mxu0 0.0
    %378 = vmatpush1.msra.mxu0 0.0
    %379 = vmatprep.subr.mxu0 0.0
    %380 = vmatpush1.msra.mxu0 0.0
    %381 = vmatprep.subr.mxu0 0.0
    %382 = vmatpush1.msra.mxu0 0.0
    %383 = vmatprep.subr.mxu0 0.0
    %384 = vmatpush1.msra.mxu0 0.0
    %385 = vmatprep.subr.mxu0 0.0
    %386 = vmatpush1.msra.mxu0 0.0
    %387 = vmatprep.subr.mxu0 0.0
    %388 = vmatpush1.msra.mxu0 0.0
    %389 = vmatprep.subr.mxu0 0.0
    %390 = vmatpush1.msra.mxu0 0.0
    %391 = vmatprep.subr.mxu0 0.0
    %392 = vmatpush1.msra.mxu0 0.0
    %393 = vmatprep.subr.mxu0 0.0
    %394 = vmatpush1.msra.mxu0 0.0
    %395 = vmatprep.subr.mxu0 0.0
    %396 = vmatpush1.msra.mxu0 0.0
    %397 = vmatprep.subr.mxu0 0.0
    %398 = vmatpush1.msra.mxu0 0.0
    %399 = vmatprep.subr.mxu0 0.0
    %400 = vmatpush1.msra.mxu0 0.0
    %401 = vmatprep.subr.mxu0 0.0
    %402 = vmatpush1.msra.mxu0 0.0
    %403 = vmatprep.subr.mxu0 0.0
    %404 = vmatpush1.msra.mxu0 0.0
    %405 = vmatprep.subr.mxu0 0.0
    %406 = vmatpush1.msra.mxu0 0.0
    %407 = vmatprep.subr.mxu0 0.0
    %408 = vmatpush1.msra.mxu0 0.0
    %409 = vmatprep.subr.mxu0 0.0
    %410 = vmatpush1.msra.mxu0 0.0
    %411 = vmatprep.subr.mxu0 0.0
    %412 = vmatpush1.msra.mxu0 0.0
    %413 = vmatprep.subr.mxu0 0.0
    %414 = vmatpush1.msra.mxu0 0.0
    %415 = vmatprep.mubr.f32.mxu0 0.0
    %416 = vmatmul.mubr.f32.gmra.mrb[0].mxu0 %v349
    %v417 = vpop.f32.mrb[0].mxu0
    %v418 = vadd.f32 %v345, %v417
    %v419 = vpop.f32.mrb[0].mxu0
    %420 = vdwg.mxu0
    %vm421 = vcmask 33792
    %422 = vst.msk [vmem:[#allocation2] sm:$0x3] %vm421, %v418
    // Predicated region
    $region18: #{tpu_custom_call.1} parent=1 // pred_check
      _
    $region19: #{tpu_custom_call.1} parent=1 // pred_check_branch
      %424 = sbr.rel (0) target = $region21
    $region20: #{tpu_custom_call.1} parent=1 // pred_region
      %s426 = ssub.s32 32, 32
      %427 = vsyncadd [#allocation3], %s426
      %s429 = sshll.u32 [#allocation2], 4
      %s430 = int_to_ptr.vmem [resolvable:$true] %s429
      %432 = dma.vmem_to_hbm [thread:$0]  %s430, 32, %s4, [#allocation3]
    $region21: #{tpu_custom_call.1} parent=1 // pred_fallthru
      _
    // Predicated region
    $region22: #{tpu_custom_call.1} parent=1 // pred_check
      _
    $region23: #{tpu_custom_call.1} parent=1 // pred_check_branch
      %434 = sbr.rel (0) target = $region25
    $region24: #{tpu_custom_call.1} parent=1 // pred_region
      %435 = dma.done [#allocation3], 32
    $region25: #{tpu_custom_call.1} parent=1 // pred_fallthru
      _
    %436 = vsyncpa [#allocation3], 1

</llo_original>
